<compile_context>
chip_gen: v6e
topology: v6e:2x2x1
jax: 0.10.0
libtpu: 0.0.40
codegen_flags: <defaults>
</compile_context>

<pallas_src>
import math
import numpy as np
import jax
import jax.numpy as jnp
from jax.experimental import pallas as pl
from jax.experimental.pallas import tpu as pltpu

EPS = 1e-9

_VMEM_LIMIT_BYTES = 32 * 1024 * 1024   # explicit scoped-VMEM limit (safe on v5e/v6e/v7x)
_TILE_BUDGET_BYTES = 16 * 1024 * 1024  # budget for the double-buffered x/y tiles


def _se_kernel(x_ref, w1t_ref, b1_ref, w2t_ref, b2_ref, y_ref, ms_ref):
    Nb, C, HW = x_ref.shape
    xb = x_ref[...]                                              # (Nb, C, HW), input dtype

    # Global average pool over the flattened spatial (lane) axis, f32 accumulation.
    pooled = jnp.sum(xb, axis=-1, dtype=jnp.float32) * (1.0 / HW)        # (Nb, C)

    # fc1 (1x1 conv == matmul) + ReLU
    h = jnp.maximum(
        jnp.dot(pooled, w1t_ref[...], preferred_element_type=jnp.float32)
        + b1_ref[...], 0.0)                                              # (Nb, Cr)

    # fc2 (1x1 conv == matmul) + sigmoid.  Weights are pre-deinterleaved in the wrapper
    # so o[:, :C] == PyTorch x[:, ::2] ("mean") and o[:, C:] == x[:, 1::2] ("std").
    o = jax.nn.sigmoid(
        jnp.dot(h, w2t_ref[...], preferred_element_type=jnp.float32)
        + b2_ref[...])                                                   # (Nb, 2C)

    mean = o[:, :C]                                                      # (Nb, C)

    # module_input * mean (broadcast over H*W), computed in the input dtype.
    y_ref[...] = (xb * mean[:, :, None].astype(xb.dtype)).astype(y_ref.dtype)
    ms_ref[...] = o.reshape(Nb, 1, 2 * C)


def _pick_block_n(N, C, HW, itemsize):
    """Largest Nb with N % Nb == 0 that fits the VMEM tile budget and (for N>=2)
    leaves at least 2 grid steps so both v7x TensorCores get work."""
    per_img = 2 * 2 * C * HW * itemsize       # x + y, double-buffered
    cap = max(1, _TILE_BUDGET_BYTES // max(per_img, 1))
    best = 1
    for nb in range(1, N + 1):
        if N % nb == 0 and nb <= cap and (N // nb >= 2 or N == 1):
            best = nb
    return best


def preprocess_params(params):
    """One-time weight prep (call at init, NOT per forward): fold the even/odd
    output-channel deinterleave of fc2 plus the matmul transposes / bias reshapes
    into the stored parameters."""
    w1 = jnp.asarray(params["fc1_w"], jnp.float32)        # (Cr, C)
    b1 = jnp.asarray(params["fc1_b"], jnp.float32)        # (Cr,)
    w2 = jnp.asarray(params["fc2_w"], jnp.float32)        # (2C, Cr)
    b2 = jnp.asarray(params["fc2_b"], jnp.float32)        # (2C,)
    Cr, C = w1.shape
    perm = np.concatenate([np.arange(0, 2 * C, 2), np.arange(1, 2 * C, 2)])
    w2p, b2p = w2[perm], b2[perm]
    return {
        "w1t": jnp.transpose(w1),                         # (C, Cr)
        "b1r": b1.reshape(1, Cr),                         # (1, Cr)
        "w2pt": jnp.transpose(w2p),                       # (Cr, 2C)
        "b2r": b2p.reshape(1, 2 * C),                     # (1, 2C)
    }


def se_module_forward(x, prep, frequency_index, gt_lst_module,
                      training=False, gt_lst=None):
    """Pallas implementation of the SE attention forward used by Bottleneck30.

    x: (N, C, H, W); prep: output of preprocess_params().
    Returns:
      training=False: (x * mean, (mean, std))        mean/std shaped (N, C, 1, 1)
      training=True : (x * mean, [g_loss, mean])
    """
    N, C, H, W = x.shape
    HW = H * W
    Cr = prep["w1t"].shape[1]

    Nb = _pick_block_n(N, C, HW, x.dtype.itemsize)
    grid = (N // Nb,)

    x3 = x.reshape(N, C, HW)

    y3, ms = pl.pallas_call(
        _se_kernel,
        out_shape=(
            jax.ShapeDtypeStruct((N, C, HW), x.dtype),
            jax.ShapeDtypeStruct((N, 1, 2 * C), jnp.float32),
        ),
        grid_spec=pltpu.PrefetchScalarGridSpec(
            num_scalar_prefetch=0,
            grid=grid,
            in_specs=[
                pl.BlockSpec((Nb, C, HW), lambda n: (n, 0, 0)),
                pl.BlockSpec((C, Cr), lambda n: (0, 0)),
                pl.BlockSpec((1, Cr), lambda n: (0, 0)),
                pl.BlockSpec((Cr, 2 * C), lambda n: (0, 0)),
                pl.BlockSpec((1, 2 * C), lambda n: (0, 0)),
            ],
            out_specs=[
                pl.BlockSpec((Nb, C, HW), lambda n: (n, 0, 0)),
                pl.BlockSpec((Nb, 1, 2 * C), lambda n: (n, 0, 0)),
            ],
        ),
        compiler_params=pltpu.CompilerParams(
            dimension_semantics=("parallel",),
            vmem_limit_bytes=_VMEM_LIMIT_BYTES),
    )(x3, prep["w1t"], prep["b1r"], prep["w2pt"], prep["b2r"])

    y = y3.reshape(N, C, H, W)
    ms2 = ms.reshape(N, 2 * C)
    mean = ms2[:, :C].reshape(N, C, 1, 1)
    std = ms2[:, C:].reshape(N, C, 1, 1)

    if not training:
        return y, (mean, std)

    # Training branch: tiny Gaussian-NLL scalar reduction done in plain JAX glue.
    if gt_lst is None:
        gt = gt_lst_module[frequency_index]
    elif isinstance(gt_lst, list):
        gt = gt_lst[frequency_index]
    else:
        gt = gt_lst
    var = std + EPS
    pdf = jnp.exp(-((mean - gt) ** 2) / var / 2.0) / jnp.sqrt(2.0 * np.pi * var)
    pdf = jnp.clip(pdf, EPS)
    g_loss = jnp.mean(-jnp.log(pdf) / 2.0)
    return y, [g_loss, mean]


def _reference_forward(x, params, frequency_index, gt_lst_module, training=False):
    """Pure-JAX reference mirroring the PyTorch module."""
    w1, b1 = params["fc1_w"], params["fc1_b"]
    w2, b2 = params["fc2_w"], params["fc2_b"]
    pooled = jnp.mean(x, axis=(2, 3))                       # (N, C)
    h = jnp.maximum(pooled @ w1.T + b1, 0.0)                # (N, Cr)
    o = jax.nn.sigmoid(h @ w2.T + b2)                       # (N, 2C)
    mean = o[:, ::2][:, :, None, None]
    std = o[:, 1::2][:, :, None, None]
    y = x * mean
    if not training:
        return y, (mean, std)
    gt = gt_lst_module[frequency_index]
    var = std + EPS
    pdf = jnp.exp(-((mean - gt) ** 2) / var / 2.0) / jnp.sqrt(2.0 * np.pi * var)
    pdf = jnp.clip(pdf, EPS)
    g_loss = jnp.mean(-jnp.log(pdf) / 2.0)
    return y, [g_loss, mean]


def init_params(key, channels, reduction):
    """Deterministic init matching PyTorch Conv2d default (kaiming_uniform a=sqrt(5))."""
    cr = channels // reduction
    k1, k2, k3, k4 = jax.random.split(key, 4)
    bound1 = 1.0 / math.sqrt(channels)      # fan_in of fc1 (1x1 conv)
    bound2 = 1.0 / math.sqrt(cr)            # fan_in of fc2
    return {
        "fc1_w": jax.random.uniform(k1, (cr, channels), jnp.float32, -bound1, bound1),
        "fc1_b": jax.random.uniform(k2, (cr,), jnp.float32, -bound1, bound1),
        "fc2_w": jax.random.uniform(k3, (2 * channels, cr), jnp.float32, -bound2, bound2),
        "fc2_b": jax.random.uniform(k4, (2 * channels,), jnp.float32, -bound2, bound2),
    }


if __name__ == "__main__":
    # SEModule(channels=8, reduction_=21) -> reduction=2, mean_true=1 -> gt_lst all 1.0
    channels = 8
    reduction_ = 21
    reduction = reduction_ // 10
    mean_true = reduction_ % 10
    gt_tables = {
        0: [0.5] * 16,
        1: [1.0] * 16,
        2: [EPS] * 16,
        3: [1.0, 1.0, 1.0, 1.0, 1.0, 0.5, 0.5, EPS, 1.0, 0.5, 0.5, EPS,
            1.0, EPS, EPS, EPS],
        4: [EPS, EPS, EPS, EPS, EPS, 0.5, 0.5, 1.0, EPS, 0.5, 0.5, 1.0,
            EPS, 1.0, 1.0, 1.0],
    }
    gt_lst_module = gt_tables[mean_true]
    frequency_index = 3

    key = jax.random.PRNGKey(0)
    kx, kp = jax.random.split(key)
    x = jax.random.normal(kx, (2, channels, 16, 16), jnp.float32)
    params = init_params(kp, channels, reduction)
    prep = preprocess_params(params)          # one-time weight prep (not per-call)

    # Eval-mode forward (module_input * mean, (mean, std))
    y, (mean, std) = se_module_forward(x, prep, frequency_index,
                                       gt_lst_module, training=False)
    jax.block_until_ready((y, mean, std))

    # Training-mode forward (module_input * mean, [g_loss, mean])
    y_tr, (g_loss, mean_tr) = se_module_forward(x, prep, frequency_index,
                                                gt_lst_module, training=True)
    jax.block_until_ready((y_tr, g_loss, mean_tr))

    # Verify against pure-JAX reference.
    y_ref, (mean_ref, std_ref) = _reference_forward(
        x, params, frequency_index, gt_lst_module, training=False)
    _, (g_loss_ref, _) = _reference_forward(
        x, params, frequency_index, gt_lst_module, training=True)

    np.testing.assert_allclose(np.asarray(y), np.asarray(y_ref), rtol=1e-5, atol=1e-5)
    np.testing.assert_allclose(np.asarray(mean), np.asarray(mean_ref), rtol=1e-5, atol=1e-5)
    np.testing.assert_allclose(np.asarray(std), np.asarray(std_ref), rtol=1e-5, atol=1e-5)
    np.testing.assert_allclose(np.asarray(g_loss), np.asarray(g_loss_ref), rtol=1e-5, atol=1e-5)

    print("KERNEL_OK")
</pallas_src>

<mosaic_0001>
module attributes {stable_mosaic.version = 11 : i64} {
  func.func @_se_kernel(%arg0: i32, %arg1: memref<1x8x256xf32, #tpu.memory_space<vmem>>, %arg2: memref<8x4xf32, #tpu.memory_space<vmem>>, %arg3: memref<1x4xf32, #tpu.memory_space<vmem>>, %arg4: memref<4x16xf32, #tpu.memory_space<vmem>>, %arg5: memref<1x16xf32, #tpu.memory_space<vmem>>, %arg6: memref<1x8x256xf32, #tpu.memory_space<vmem>>, %arg7: memref<1x1x16xf32, #tpu.memory_space<vmem>>) attributes {dimension_semantics = [#tpu.dimension_semantics<parallel>], iteration_bounds = array<i64: 2>, scalar_prefetch = 0 : i64, scratch_operands = 0 : i64, tpu.core_type = #tpu.core_type<tc>, window_params = [{transform_indices = @transform_0, window_bounds = array<i64: 1, 8, 256>}, {pipeline_mode = #tpu.pipeline_mode<synchronous>, transform_indices = @transform_1, window_bounds = array<i64: 8, 4>}, {pipeline_mode = #tpu.pipeline_mode<synchronous>, transform_indices = @transform_2, window_bounds = array<i64: 1, 4>}, {pipeline_mode = #tpu.pipeline_mode<synchronous>, transform_indices = @transform_3, window_bounds = array<i64: 4, 16>}, {pipeline_mode = #tpu.pipeline_mode<synchronous>, transform_indices = @transform_4, window_bounds = array<i64: 1, 16>}, {transform_indices = @transform_5, window_bounds = array<i64: 1, 8, 256>}, {transform_indices = @transform_6, window_bounds = array<i64: 1, 1, 16>}]} {
    %c0 = arith.constant 0 : index
    %c0_0 = arith.constant 0 : index
    %c0_1 = arith.constant 0 : index
    %0 = vector.load %arg1[%c0, %c0_0, %c0_1] : memref<1x8x256xf32, #tpu.memory_space<vmem>>, vector<1x8x256xf32>
    %cst = arith.constant dense<0.000000e+00> : vector<1x8xf32>
    %1 = vector.multi_reduction <add>, %0, %cst [2] : vector<1x8x256xf32> to vector<1x8xf32>
    %cst_2 = arith.constant 3.906250e-03 : f32
    %2 = vector.broadcast %cst_2 : f32 to vector<1x8xf32>
    %3 = arith.mulf %1, %2 : vector<1x8xf32>
    %c0_3 = arith.constant 0 : index
    %c0_4 = arith.constant 0 : index
    %4 = vector.load %arg2[%c0_3, %c0_4] : memref<8x4xf32, #tpu.memory_space<vmem>>, vector<8x4xf32>
    %cst_5 = arith.constant dense<0.000000e+00> : vector<1x4xf32>
    %5 = tpu.matmul %3, %4, %cst_5 {dimension_numbers = #tpu.dot_dimension_numbers<[1], [0], [0], [1], [0, 0, 1, 1], [], []>} : vector<1x8xf32>, vector<8x4xf32>, vector<1x4xf32> -> vector<1x4xf32>
    %c0_6 = arith.constant 0 : index
    %c0_7 = arith.constant 0 : index
    %6 = vector.load %arg3[%c0_6, %c0_7] : memref<1x4xf32, #tpu.memory_space<vmem>>, vector<1x4xf32>
    %7 = arith.addf %5, %6 : vector<1x4xf32>
    %cst_8 = arith.constant 0.000000e+00 : f32
    %8 = vector.broadcast %cst_8 : f32 to vector<1x4xf32>
    %9 = arith.maximumf %7, %8 : vector<1x4xf32>
    %c0_9 = arith.constant 0 : index
    %c0_10 = arith.constant 0 : index
    %10 = vector.load %arg4[%c0_9, %c0_10] : memref<4x16xf32, #tpu.memory_space<vmem>>, vector<4x16xf32>
    %cst_11 = arith.constant dense<0.000000e+00> : vector<1x16xf32>
    %11 = tpu.matmul %9, %10, %cst_11 {dimension_numbers = #tpu.dot_dimension_numbers<[1], [0], [0], [1], [0, 0, 1, 1], [], []>} : vector<1x4xf32>, vector<4x16xf32>, vector<1x16xf32> -> vector<1x16xf32>
    %c0_12 = arith.constant 0 : index
    %c0_13 = arith.constant 0 : index
    %12 = vector.load %arg5[%c0_12, %c0_13] : memref<1x16xf32, #tpu.memory_space<vmem>>, vector<1x16xf32>
    %13 = arith.addf %11, %12 : vector<1x16xf32>
    %14 = arith.negf %13 : vector<1x16xf32>
    %15 = math.exp %14 : vector<1x16xf32>
    %cst_14 = arith.constant 1.000000e+00 : f32
    %16 = vector.broadcast %cst_14 : f32 to vector<1x16xf32>
    %17 = arith.addf %16, %15 : vector<1x16xf32>
    %18 = arith.divf %16, %17 : vector<1x16xf32>
    %19 = vector.extract_strided_slice %18 {offsets = [0, 0], sizes = [1, 8], strides = [1, 1]} : vector<1x16xf32> to vector<1x8xf32>
    %20 = vector.shape_cast %19 : vector<1x8xf32> to vector<1x8x1xf32>
    %21 = vector.broadcast %20 : vector<1x8x1xf32> to vector<1x8x256xf32>
    %22 = arith.mulf %0, %21 : vector<1x8x256xf32>
    %c0_15 = arith.constant 0 : index
    %c0_16 = arith.constant 0 : index
    %c0_17 = arith.constant 0 : index
    %23 = vector.load %arg6[%c0_15, %c0_16, %c0_17] : memref<1x8x256xf32, #tpu.memory_space<vmem>>, vector<1x8x256xf32>
    tpu.vector_store %arg6[%c0_15, %c0_16, %c0_17], %22 {strides = array<i32>} : memref<1x8x256xf32, #tpu.memory_space<vmem>>, vector<1x8x256xf32>,
    %24 = vector.shape_cast %18 : vector<1x16xf32> to vector<1x1x16xf32>
    %c0_18 = arith.constant 0 : index
    %c0_19 = arith.constant 0 : index
    %c0_20 = arith.constant 0 : index
    %25 = vector.load %arg7[%c0_18, %c0_19, %c0_20] : memref<1x1x16xf32, #tpu.memory_space<vmem>>, vector<1x1x16xf32>
    tpu.vector_store %arg7[%c0_18, %c0_19, %c0_20], %24 {strides = array<i32>} : memref<1x1x16xf32, #tpu.memory_space<vmem>>, vector<1x1x16xf32>,
    return
  }
  func.func @transform_0(%arg0: i32) -> (i32, i32, i32) {
    %c0_i32 = arith.constant 0 : i32
    %c0_i32_0 = arith.constant 0 : i32
    %c0_i32_1 = arith.constant 0 : i32
    return %arg0, %c0_i32, %c0_i32_0 : i32, i32, i32
  }
  func.func @transform_1(%arg0: i32) -> (i32, i32) {
    %c0_i32 = arith.constant 0 : i32
    %c0_i32_0 = arith.constant 0 : i32
    %c0_i32_1 = arith.constant 0 : i32
    return %c0_i32, %c0_i32_0 : i32, i32
  }
  func.func @transform_2(%arg0: i32) -> (i32, i32) {
    %c0_i32 = arith.constant 0 : i32
    %c0_i32_0 = arith.constant 0 : i32
    %c0_i32_1 = arith.constant 0 : i32
    return %c0_i32, %c0_i32_0 : i32, i32
  }
  func.func @transform_3(%arg0: i32) -> (i32, i32) {
    %c0_i32 = arith.constant 0 : i32
    %c0_i32_0 = arith.constant 0 : i32
    %c0_i32_1 = arith.constant 0 : i32
    return %c0_i32, %c0_i32_0 : i32, i32
  }
  func.func @transform_4(%arg0: i32) -> (i32, i32) {
    %c0_i32 = arith.constant 0 : i32
    %c0_i32_0 = arith.constant 0 : i32
    %c0_i32_1 = arith.constant 0 : i32
    return %c0_i32, %c0_i32_0 : i32, i32
  }
  func.func @transform_5(%arg0: i32) -> (i32, i32, i32) {
    %c0_i32 = arith.constant 0 : i32
    %c0_i32_0 = arith.constant 0 : i32
    %c0_i32_1 = arith.constant 0 : i32
    return %arg0, %c0_i32, %c0_i32_0 : i32, i32, i32
  }
  func.func @transform_6(%arg0: i32) -> (i32, i32, i32) {
    %c0_i32 = arith.constant 0 : i32
    %c0_i32_0 = arith.constant 0 : i32
    %c0_i32_1 = arith.constant 0 : i32
    return %arg0, %c0_i32, %c0_i32_0 : i32, i32, i32
  }
}

</mosaic_0001>

<llo_original>
// kernel: tpu_custom_call.1
$region0: #{tpu_custom_call.1}
  #allocation0 [shape = 'u32[]', space=smem, size = 0x4, offset = 0x4, fixed_abs, tag = 'smem constant byte address 0x4 - core index']
  #allocation1 [shape = 'u32[144,128]{1,0:T(1,128)}', space=vmem, size = 0x12000, scoped, tag = 'internal scratch']
  %s0 = inlined_call_operand.hbm [shape: f32[2,8,256], index: 0, kind: input, shape index: {}]
  %s1 = inlined_call_operand.vmem [shape: f32[8,4], index: 1, kind: input, shape index: {}]
  %s2 = inlined_call_operand.vmem [shape: f32[1,4], index: 2, kind: input, shape index: {}]
  %s3 = inlined_call_operand.vmem [shape: f32[4,16], index: 3, kind: input, shape index: {}]
  %s4 = inlined_call_operand.vmem [shape: f32[1,16], index: 4, kind: input, shape index: {}]
  %s5 = inlined_call_operand.hbm [shape: f32[2,8,256], index: 5, kind: output, shape index: {0}]
  %s6 = inlined_call_operand.hbm [shape: f32[2,1,16], index: 6, kind: output, shape index: {1}]
  %7 = xla_tuple %s5, %s6
  %s8 = sld [smem:[#allocation0]]
  $region65: #{tpu_custom_call.1} parent=0
    _
  %s10 = ssub.s32 1, %s8
  %s11 = scalar_select 0, %s10, %s8
  $region1: #{tpu_custom_call.1} parent=0
    #allocation2 [shape = 'u8[16384]{0}', space=vmem, size = 0x4000, scoped, tag = 'input window, operand 0']
    #allocation3 [shape = 's32[2]{0}', space=sflag, size = 0x8, scoped, tag = 'scoped memory for tpu_custom_call.1']
    #allocation4 [shape = 's32[2]{0}', space=sflag, size = 0x8, scoped, tag = 'scoped memory for tpu_custom_call.1']
    #allocation5 [shape = 'u8[16384]{0}', space=vmem, size = 0x4000, scoped, tag = 'output window, operand 0']
    #allocation6 [shape = 'u8[1024]{0}', space=vmem, size = 0x400, scoped, tag = 'output window, operand 1']
    #allocation7 [shape = 's32[2]{0}', space=sflag, size = 0x8, scoped, tag = 'scoped memory for tpu_custom_call.1']
    %12 = vsyncpa [#allocation3], 0
    %s13 = scalar_lea.sflag [#allocation3], 1
    %14 = vsyncpa %s13, 0
    %15 = vsyncpa [#allocation4], 0
    %s16 = scalar_lea.sflag [#allocation4], 1
    %17 = vsyncpa %s16, 0
    %18 = vsyncpa [#allocation7], 0
    %s19 = scalar_lea.sflag [#allocation7], 1
    %20 = vsyncpa %s19, 0
    loop: start=0, step=1, limit=4
    $region2: #{tpu_custom_call.1} parent=1 // loop_pre_header
      _
    $region3: #{tpu_custom_call.1} parent=1 // loop_header
      %s22 = sphi 0, %s26
      %p23 = scmp.ge.s32.totalorder %s22, 4
      %s32 = sphi 0, %s34
      %s35 = sphi 0, %s32
      %s36 = sphi 0, %s35
      %s52 = sphi 0, %s36
      %s56 = sphi 0, %s56
      %s58 = sphi 0, %s56
      %s59 = sphi 0, %s58
      %s73 = sphi 0, %s59
      %s77 = sphi 0, %s77
      %s79 = sphi 0, %s77
      %s80 = sphi 0, %s79
      %s94 = sphi 0, %s80
      %s98 = sphi 0, %s98
      %s100 = sphi 0, %s98
      %s101 = sphi 0, %s100
      %s115 = sphi 0, %s101
      %s119 = sphi 0, %s119
      %s121 = sphi 0, %s119
      %s122 = sphi 0, %s121
      %s136 = sphi 0, %s122
      %s142 = sphi 0, %s144
      %s145 = sphi 0, %s142
      %s146 = sphi 0, %s145
      %s162 = sphi 0, %s146
      %s168 = sphi 0, %s170
      %s171 = sphi 0, %s168
      %s172 = sphi 0, %s171
      %s188 = sphi 0, %s172
    $region4: #{tpu_custom_call.1} parent=1 // loop_header_branch
      %25 = sbr.rel (%p23) target = $region8
    $region5: #{tpu_custom_call.1} parent=1 // loop_body
      %s27 = ssub.s32 %s22, 1
      %s28 = ssub.s32 %s22, 2
      %s29 = sadd.s32 %s22, 1
      %s30 = ssub.s32 %s22, %s29
      %p31 = scmp.eq.s32.totalorder %s30, 0
      %s33 = sadd.s32 %s32, 1
      %s34 = scalar_select %p31, %s32, %s33
      %p37 = pneg %p31
      %p38 = scmp.eq.s32.totalorder %s22, 1
      %p39 = por %p37, %p38
      %p40 = scmp.ne.s32.totalorder %s32, %s35
      %p41 = scmp.eq.s32.totalorder %s22, 0
      %p42 = por %p40, %p41
      %p43 = scmp.ne.s32.totalorder %s32, %s35
      %p44 = scmp.eq.s32.totalorder %s27, 1
      %p45 = por %p43, %p44
      %p46 = scmp.ne.s32.totalorder %s35, %s36
      %p47 = scmp.eq.s32.totalorder %s27, 0
      %p48 = por %p46, %p47
      %p49 = scmp.ne.s32.totalorder %s35, %s36
      %p50 = scmp.eq.s32.totalorder %s28, 1
      %p51 = por %p49, %p50
      %p53 = scmp.ne.s32.totalorder %s36, %s52
      %p54 = scmp.eq.s32.totalorder %s28, 0
      %p55 = por %p53, %p54
      %s57 = sadd.s32 %s56, 1
      %p60 = scmp.eq.s32.totalorder %s22, 1
      %p61 = scmp.ne.s32.totalorder %s56, %s58
      %p62 = scmp.eq.s32.totalorder %s22, 0
      %p63 = por %p61, %p62
      %p64 = scmp.ne.s32.totalorder %s56, %s58
      %p65 = scmp.eq.s32.totalorder %s27, 1
      %p66 = por %p64, %p65
      %p67 = scmp.ne.s32.totalorder %s58, %s59
      %p68 = scmp.eq.s32.totalorder %s27, 0
      %p69 = por %p67, %p68
      %p70 = scmp.ne.s32.totalorder %s58, %s59
      %p71 = scmp.eq.s32.totalorder %s28, 1
      %p72 = por %p70, %p71
      %p74 = scmp.ne.s32.totalorder %s59, %s73
      %p75 = scmp.eq.s32.totalorder %s28, 0
      %p76 = por %p74, %p75
      %s78 = sadd.s32 %s77, 1
      %p81 = scmp.eq.s32.totalorder %s22, 1
      %p82 = scmp.ne.s32.totalorder %s77, %s79
      %p83 = scmp.eq.s32.totalorder %s22, 0
      %p84 = por %p82, %p83
      %p85 = scmp.ne.s32.totalorder %s77, %s79
      %p86 = scmp.eq.s32.totalorder %s27, 1
      %p87 = por %p85, %p86
      %p88 = scmp.ne.s32.totalorder %s79, %s80
      %p89 = scmp.eq.s32.totalorder %s27, 0
      %p90 = por %p88, %p89
      %p91 = scmp.ne.s32.totalorder %s79, %s80
      %p92 = scmp.eq.s32.totalorder %s28, 1
      %p93 = por %p91, %p92
      %p95 = scmp.ne.s32.totalorder %s80, %s94
      %p96 = scmp.eq.s32.totalorder %s28, 0
      %p97 = por %p95, %p96
      %s99 = sadd.s32 %s98, 1
      %p102 = scmp.eq.s32.totalorder %s22, 1
      %p103 = scmp.ne.s32.totalorder %s98, %s100
      %p104 = scmp.eq.s32.totalorder %s22, 0
      %p105 = por %p103, %p104
      %p106 = scmp.ne.s32.totalorder %s98, %s100
      %p107 = scmp.eq.s32.totalorder %s27, 1
      %p108 = por %p106, %p107
      %p109 = scmp.ne.s32.totalorder %s100, %s101
      %p110 = scmp.eq.s32.totalorder %s27, 0
      %p111 = por %p109, %p110
      %p112 = scmp.ne.s32.totalorder %s100, %s101
      %p113 = scmp.eq.s32.totalorder %s28, 1
      %p114 = por %p112, %p113
      %p116 = scmp.ne.s32.totalorder %s101, %s115
      %p117 = scmp.eq.s32.totalorder %s28, 0
      %p118 = por %p116, %p117
      %s120 = sadd.s32 %s119, 1
      %p123 = scmp.eq.s32.totalorder %s22, 1
      %p124 = scmp.ne.s32.totalorder %s119, %s121
      %p125 = scmp.eq.s32.totalorder %s22, 0
      %p126 = por %p124, %p125
      %p127 = scmp.ne.s32.totalorder %s119, %s121
      %p128 = scmp.eq.s32.totalorder %s27, 1
      %p129 = por %p127, %p128
      %p130 = scmp.ne.s32.totalorder %s121, %s122
      %p131 = scmp.eq.s32.totalorder %s27, 0
      %p132 = por %p130, %p131
      %p133 = scmp.ne.s32.totalorder %s121, %s122
      %p134 = scmp.eq.s32.totalorder %s28, 1
      %p135 = por %p133, %p134
      %p137 = scmp.ne.s32.totalorder %s122, %s136
      %p138 = scmp.eq.s32.totalorder %s28, 0
      %p139 = por %p137, %p138
      %s140 = ssub.s32 %s22, %s29
      %p141 = scmp.eq.s32.totalorder %s140, 0
      %s143 = sadd.s32 %s142, 1
      %s144 = scalar_select %p141, %s142, %s143
      %p147 = pneg %p141
      %p148 = scmp.eq.s32.totalorder %s22, 1
      %p149 = por %p147, %p148
      %p150 = scmp.ne.s32.totalorder %s142, %s145
      %p151 = scmp.eq.s32.totalorder %s22, 0
      %p152 = por %p150, %p151
      %p153 = scmp.ne.s32.totalorder %s142, %s145
      %p154 = scmp.eq.s32.totalorder %s27, 1
      %p155 = por %p153, %p154
      %p156 = scmp.ne.s32.totalorder %s145, %s146
      %p157 = scmp.eq.s32.totalorder %s27, 0
      %p158 = por %p156, %p157
      %p159 = scmp.ne.s32.totalorder %s145, %s146
      %p160 = scmp.eq.s32.totalorder %s28, 1
      %p161 = por %p159, %p160
      %p163 = scmp.ne.s32.totalorder %s146, %s162
      %p164 = scmp.eq.s32.totalorder %s28, 0
      %p165 = por %p163, %p164
      %s166 = ssub.s32 %s22, %s29
      %p167 = scmp.eq.s32.totalorder %s166, 0
      %s169 = sadd.s32 %s168, 1
      %s170 = scalar_select %p167, %s168, %s169
      %p173 = pneg %p167
      %p174 = scmp.eq.s32.totalorder %s22, 1
      %p175 = por %p173, %p174
      %p176 = scmp.ne.s32.totalorder %s168, %s171
      %p177 = scmp.eq.s32.totalorder %s22, 0
      %p178 = por %p176, %p177
      %p179 = scmp.ne.s32.totalorder %s168, %s171
      %p180 = scmp.eq.s32.totalorder %s27, 1
      %p181 = por %p179, %p180
      %p182 = scmp.ne.s32.totalorder %s171, %s172
      %p183 = scmp.eq.s32.totalorder %s27, 0
      %p184 = por %p182, %p183
      %p185 = scmp.ne.s32.totalorder %s171, %s172
      %p186 = scmp.eq.s32.totalorder %s28, 1
      %p187 = por %p185, %p186
      %p189 = scmp.ne.s32.totalorder %s172, %s188
      %p190 = scmp.eq.s32.totalorder %s28, 0
      %p191 = por %p189, %p190
      %p192 = scmp.le.s32.totalorder 1, %s22
      %p193 = scmp.lt.s32.totalorder %s22, 3
      %p194 = pnand %p192, %p193
      %p195 = pneg %p194
      // Predicated region
      $region9: #{tpu_custom_call.1} parent=5 // pred_check
        _
      $region10: #{tpu_custom_call.1} parent=5 // pred_check_branch
        %197 = sbr.rel (%p194) target = $region12
      $region11: #{tpu_custom_call.1} parent=5 // pred_region
        %s198 = ssub.s32 %s22, 1
        // Predicated region
        $region13: #{tpu_custom_call.1} parent=11 // pred_check
          %p199 = pneg %p69
        $region14: #{tpu_custom_call.1} parent=11 // pred_check_branch
          %201 = sbr.rel (%p199) target = $region16
        $region15: #{tpu_custom_call.1} parent=11 // pred_region
          _
        $region16: #{tpu_custom_call.1} parent=11 // pred_fallthru
          _
        // Predicated region
        $region17: #{tpu_custom_call.1} parent=11 // pred_check
          %p202 = pneg %p90
        $region18: #{tpu_custom_call.1} parent=11 // pred_check_branch
          %204 = sbr.rel (%p202) target = $region20
        $region19: #{tpu_custom_call.1} parent=11 // pred_region
          _
        $region20: #{tpu_custom_call.1} parent=11 // pred_fallthru
          _
        // Predicated region
        $region21: #{tpu_custom_call.1} parent=11 // pred_check
          %p205 = pneg %p111
        $region22: #{tpu_custom_call.1} parent=11 // pred_check_branch
          %207 = sbr.rel (%p205) target = $region24
        $region23: #{tpu_custom_call.1} parent=11 // pred_region
          _
        $region24: #{tpu_custom_call.1} parent=11 // pred_fallthru
          _
        // Predicated region
        $region25: #{tpu_custom_call.1} parent=11 // pred_check
          %p208 = pneg %p132
        $region26: #{tpu_custom_call.1} parent=11 // pred_check_branch
          %210 = sbr.rel (%p208) target = $region28
        $region27: #{tpu_custom_call.1} parent=11 // pred_region
          _
        $region28: #{tpu_custom_call.1} parent=11 // pred_fallthru
          _
      $region12: #{tpu_custom_call.1} parent=5 // pred_fallthru
        _
      %p211 = scmp.lt.s32.totalorder %s22, 2
      // Predicated region
      $region29: #{tpu_custom_call.1} parent=5 // pred_check
        %p212 = pneg %p211
      $region30: #{tpu_custom_call.1} parent=5 // pred_check_branch
        %214 = sbr.rel (%p212) target = $region32
      $region31: #{tpu_custom_call.1} parent=5 // pred_region
        // Predicated region
        $region33: #{tpu_custom_call.1} parent=31 // pred_check
          %p215 = pneg %p42
        $region34: #{tpu_custom_call.1} parent=31 // pred_check_branch
          %217 = sbr.rel (%p215) target = $region36
        $region35: #{tpu_custom_call.1} parent=31 // pred_region
          %s218 = sand.u32 %s32, 1
          %s219 = scalar_lea.sflag [#allocation3], %s218
          %s220 = sand.u32 %s32, 1
          %s221 = smul.addr %s220, 16
          %s222 = scalar_lea.vmem [#allocation2], %s221
          %s224 = ssub.s32 256, 256
          %225 = vsyncadd %s219, %s224
          %s226 = smul.addr %s22, 2
          %s227 = smul.addr %s226, 128
          %s228 = scalar_lea.hbm %s0, %s227
          %s230 = sshll.u32 %s222, 4
          %s231 = int_to_ptr.vmem [resolvable:$true] %s230
          %233 = dma.hbm_to_vmem [thread:$0]  %s228, 256, %s231, %s219
        $region36: #{tpu_custom_call.1} parent=31 // pred_fallthru
          _
      $region32: #{tpu_custom_call.1} parent=5 // pred_fallthru
        _
      %p234 = scmp.le.s32.totalorder 1, %s22
      %p235 = scmp.lt.s32.totalorder %s22, 3
      %p236 = pnand %p234, %p235
      %p237 = pneg %p236
      // Predicated region
      $region37: #{tpu_custom_call.1} parent=5 // pred_check
        _
      $region38: #{tpu_custom_call.1} parent=5 // pred_check_branch
        %239 = sbr.rel (%p236) target = $region40
      $region39: #{tpu_custom_call.1} parent=5 // pred_region
        %s240 = ssub.s32 %s22, 1
        %s241 = sand.u32 %s35, 1
        %s242 = scalar_lea.sflag [#allocation3], %s241
        %s243 = sand.u32 %s35, 1
        %s244 = smul.addr %s243, 16
        %s245 = scalar_lea.vmem [#allocation2], %s244
        // Predicated region
        $region41: #{tpu_custom_call.1} parent=39 // pred_check
          %p246 = pneg %p48
        $region42: #{tpu_custom_call.1} parent=39 // pred_check_branch
          %248 = sbr.rel (%p246) target = $region44
        $region43: #{tpu_custom_call.1} parent=39 // pred_region
          %249 = dma.done %s242, 256
        $region44: #{tpu_custom_call.1} parent=39 // pred_fallthru
          _
        %s250 = sand.u32 %s35, 1
        %s251 = scalar_lea.sflag [#allocation3], %s250
        %s252 = sand.u32 %s35, 1
        %s253 = smul.addr %s252, 16
        %s254 = scalar_lea.vmem [#allocation2], %s253
        %p255 = pneg %p48
        %p256 = pneg %p45
        %p257 = pneg %p69
        %p258 = pneg %p66
        %p259 = pneg %p90
        %p260 = pneg %p87
        %p261 = pneg %p111
        %p262 = pneg %p108
        %p263 = pneg %p132
        %p264 = pneg %p129
        %p265 = pneg %p158
        %p266 = pneg %p155
        %s267 = sand.u32 %s145, 1
        %s268 = scalar_lea.sflag [#allocation4], %s267
        %s269 = sand.u32 %s145, 1
        %s270 = smul.addr %s269, 16
        %s271 = scalar_lea.vmem [#allocation5], %s270
        %p272 = pneg %p184
        %p273 = pneg %p181
        %s274 = sand.u32 %s171, 1
        %s275 = scalar_lea.sflag [#allocation7], %s274
        %s276 = sand.u32 %s171, 1
        %s277 = scalar_lea.vmem [#allocation6], %s276
        %v278 = vld [vmem:[%s245] sm:$0xff]
        %v279 = vld [vmem:[%s245 + $0x8] sm:$0xff]
        %v280 = vadd.f32 %v278, %v279
        %281 = vadd.xlane.f32.xlu0 %v280
        %v282 = vpop.xlane.xlu0 %281
        %v283 = vmul.f32 %v282, 0.00390625
        %v284 = vld [vmem:[%s1] sm:$0xff]
        %v285 = vld [vmem:[%s2] sm:$0x1]
        %v287 = vlaneseq
        %v288 = vand.u32 %v287, 127
        %v289 = vlaneseq
        %v290 = vshrl.u32 %v289, 7
        %v291 = vsub.s32 %v288, %v290
        %v292 = vrot.slane %v283, %v291
        %vm293 = vcmask 64512
        %v294 = vsel %vm293, %v292, 0
        %296 = vmatprep.subr.mxu0 0.0
        %297 = vmatpush1.msra.mxu0 0.0
        %298 = vmatprep.subr.mxu0 0.0
        %299 = vmatpush1.msra.mxu0 0.0
        %300 = vmatprep.subr.mxu0 0.0
        %301 = vmatpush1.msra.mxu0 0.0
        %302 = vmatprep.subr.mxu0 0.0
        %303 = vmatpush1.msra.mxu0 0.0
        %304 = vmatprep.subr.mxu0 0.0
        %305 = vmatpush1.msra.mxu0 0.0
        %306 = vmatprep.subr.mxu0 0.0
        %307 = vmatpush1.msra.mxu0 0.0
        %308 = vmatprep.subr.mxu0 0.0
        %309 = vmatpush1.msra.mxu0 0.0
        %310 = vmatprep.subr.mxu0 0.0
        %311 = vmatpush1.msra.mxu0 0.0
        %312 = vmatprep.subr.mxu0 0.0
        %313 = vmatpush1.msra.mxu0 0.0
        %314 = vmatprep.subr.mxu0 0.0
        %315 = vmatpush1.msra.mxu0 0.0
        %316 = vmatprep.subr.mxu0 0.0
        %317 = vmatpush1.msra.mxu0 0.0
        %318 = vmatprep.subr.mxu0 0.0
        %319 = vmatpush1.msra.mxu0 0.0
        %320 = vmatprep.subr.mxu0 0.0
        %321 = vmatpush1.msra.mxu0 0.0
        %322 = vmatprep.subr.mxu0 0.0
        %323 = vmatpush1.msra.mxu0 0.0
        %324 = vmatprep.subr.mxu0 0.0
        %325 = vmatpush1.msra.mxu0 0.0
        %326 = vmatprep.subr.mxu0 0.0
        %327 = vmatpush1.msra.mxu0 %v284
        %328 = vmatprep.subr.mxu0 0.0
        %329 = vmatpush2.msra.mxu0 0.0
        %330 = vmatprep.subr.mxu0 0.0
        %331 = vmatpush2.msra.mxu0 0.0
        %332 = vmatprep.subr.mxu0 0.0
        %333 = vmatpush2.msra.mxu0 0.0
        %334 = vmatprep.subr.mxu0 0.0
        %335 = vmatpush2.msra.mxu0 0.0
        %336 = vmatprep.subr.mxu0 0.0
        %337 = vmatpush2.msra.mxu0 0.0
        %338 = vmatprep.subr.mxu0 0.0
        %339 = vmatpush2.msra.mxu0 0.0
        %340 = vmatprep.subr.mxu0 0.0
        %341 = vmatpush2.msra.mxu0 0.0
        %342 = vmatprep.subr.mxu0 0.0
        %343 = vmatpush2.msra.mxu0 0.0
        %344 = vmatprep.subr.mxu0 0.0
        %345 = vmatpush2.msra.mxu0 0.0
        %346 = vmatprep.subr.mxu0 0.0
        %347 = vmatpush2.msra.mxu0 0.0
        %348 = vmatprep.subr.mxu0 0.0
        %349 = vmatpush2.msra.mxu0 0.0
        %350 = vmatprep.subr.mxu0 0.0
        %351 = vmatpush2.msra.mxu0 0.0
        %352 = vmatprep.subr.mxu0 0.0
        %353 = vmatpush2.msra.mxu0 0.0
        %354 = vmatprep.subr.mxu0 0.0
        %355 = vmatpush2.msra.mxu0 0.0
        %356 = vmatprep.subr.mxu0 0.0
        %357 = vmatpush2.msra.mxu0 0.0
        %358 = vmatprep.subr.mxu0 0.0
        %359 = vmatpush2.msra.mxu0 0.0
        %360 = vmatprep.mubr.f32.mxu0 0.0
        %361 = vmatmul.mubr.f32.gmra.mxu0 %v294
        %v362 = vpop.f32.mrf.mxu0
        %v363 = vadd.f32 %v285, %v362
        %v364 = vpop.f32.mrf.mxu0
        %365 = vdwg.mxu0
        %v366 = vmax.f32 %v363, 0.0
        %v367 = vld [vmem:[%s3] sm:$0xf]
        %v368 = vld [vmem:[%s4] sm:$0x1]
        %vm369 = vcmask 31744
        %v371 = vsel %vm369, %v366, 0
        %vm373 = vcmask 1043456
        %v375 = vsel %vm373, %v367, 0
        %377 = vmatprep.subr.mxu0 0.0
        %378 = vmatpush1.msra.mxu0 0.0
        %379 = vmatprep.subr.mxu0 0.0
        %380 = vmatpush1.msra.mxu0 0.0
        %381 = vmatprep.subr.mxu0 0.0
        %382 = vmatpush1.msra.mxu0 0.0
        %383 = vmatprep.subr.mxu0 0.0
        %384 = vmatpush1.msra.mxu0 0.0
        %385 = vmatprep.subr.mxu0 0.0
        %386 = vmatpush1.msra.mxu0 0.0
        %387 = vmatprep.subr.mxu0 0.0
        %388 = vmatpush1.msra.mxu0 0.0
        %389 = vmatprep.subr.mxu0 0.0
        %390 = vmatpush1.msra.mxu0 0.0
        %391 = vmatprep.subr.mxu0 0.0
        %392 = vmatpush1.msra.mxu0 0.0
        %393 = vmatprep.subr.mxu0 0.0
        %394 = vmatpush1.msra.mxu0 0.0
        %395 = vmatprep.subr.mxu0 0.0
        %396 = vmatpush1.msra.mxu0 0.0
        %397 = vmatprep.subr.mxu0 0.0
        %398 = vmatpush1.msra.mxu0 0.0
        %399 = vmatprep.subr.mxu0 0.0
        %400 = vmatpush1.msra.mxu0 0.0
        %401 = vmatprep.subr.mxu0 0.0
        %402 = vmatpush1.msra.mxu0 0.0
        %403 = vmatprep.subr.mxu0 0.0
        %404 = vmatpush1.msra.mxu0 0.0
        %405 = vmatprep.subr.mxu0 0.0
        %406 = vmatpush1.msra.mxu0 0.0
        %407 = vmatprep.subr.mxu0 0.0
        %408 = vmatpush1.msra.mxu0 %v375
        %409 = vmatprep.subr.mxu0 0.0
        %410 = vmatpush2.msra.mxu0 0.0
        %411 = vmatprep.subr.mxu0 0.0
        %412 = vmatpush2.msra.mxu0 0.0
        %413 = vmatprep.subr.mxu0 0.0
        %414 = vmatpush2.msra.mxu0 0.0
        %415 = vmatprep.subr.mxu0 0.0
        %416 = vmatpush2.msra.mxu0 0.0
        %417 = vmatprep.subr.mxu0 0.0
        %418 = vmatpush2.msra.mxu0 0.0
        %419 = vmatprep.subr.mxu0 0.0
        %420 = vmatpush2.msra.mxu0 0.0
        %421 = vmatprep.subr.mxu0 0.0
        %422 = vmatpush2.msra.mxu0 0.0
        %423 = vmatprep.subr.mxu0 0.0
        %424 = vmatpush2.msra.mxu0 0.0
        %425 = vmatprep.subr.mxu0 0.0
        %426 = vmatpush2.msra.mxu0 0.0
        %427 = vmatprep.subr.mxu0 0.0
        %428 = vmatpush2.msra.mxu0 0.0
        %429 = vmatprep.subr.mxu0 0.0
        %430 = vmatpush2.msra.mxu0 0.0
        %431 = vmatprep.subr.mxu0 0.0
        %432 = vmatpush2.msra.mxu0 0.0
        %433 = vmatprep.subr.mxu0 0.0
        %434 = vmatpush2.msra.mxu0 0.0
        %435 = vmatprep.subr.mxu0 0.0
        %436 = vmatpush2.msra.mxu0 0.0
        %437 = vmatprep.subr.mxu0 0.0
        %438 = vmatpush2.msra.mxu0 0.0
        %439 = vmatprep.subr.mxu0 0.0
        %440 = vmatpush2.msra.mxu0 0.0
        %441 = vmatprep.mubr.f32.mxu0 0.0
        %442 = vmatmul.mubr.f32.gmra.mxu0 %v371
        %v443 = vpop.f32.mrf.mxu0
        %v444 = vadd.f32 %v368, %v443
        %v445 = vpop.f32.mrf.mxu0
        %446 = vdwg.mxu0
        %v447 = vxor.u32 %v444, 2147483648
        %v448 = vmul.f32 %v447, 1.442695
        %v449 = vpow.pop %v448
        %v450 = vadd.f32 %v449, 1.0
        %v451 = vrcp.pop %v450
        %v452 = vmul.f32 1.0, %v451
        %v453 = vlaneseq
        %v454 = vshrl.u32 %v453, 7
        %v455 = vsub.s32 0, %v454
        %v456 = vrot.slane %v452, %v455
        %458 = vbcast.lane.b32.xlu0 %v456, 256
        %v459 = vpop.permute.xlu0 %458
        %v460 = vmul.f32 %v278, %v459
        %v461 = vmul.f32 %v279, %v459
        %462 = vst [vmem:[%s271] sm:$0xff] %v460
        %463 = vst [vmem:[%s271 + $0x8] sm:$0xff] %v461
        %vm464 = vcmask 122880
        %465 = vst.msk [vmem:[%s277] sm:$0x1] %vm464, %v452
        %s466 = sand.u32 %s145, 1
        %s467 = scalar_lea.sflag [#allocation4], %s466
        %s468 = sand.u32 %s145, 1
        %s469 = smul.addr %s468, 16
        %s470 = scalar_lea.vmem [#allocation5], %s469
        %s471 = sand.u32 %s171, 1
        %s472 = scalar_lea.sflag [#allocation7], %s471
        %s473 = sand.u32 %s171, 1
        %s474 = scalar_lea.vmem [#allocation6], %s473
        // Predicated region
        $region45: #{tpu_custom_call.1} parent=39 // pred_check
          %p475 = pneg %p155
        $region46: #{tpu_custom_call.1} parent=39 // pred_check_branch
          %477 = sbr.rel (%p475) target = $region48
        $region47: #{tpu_custom_call.1} parent=39 // pred_region
          %s479 = ssub.s32 256, 256
          %480 = vsyncadd %s467, %s479
          %s481 = smul.addr %s27, 2
          %s482 = smul.addr %s481, 128
          %s483 = scalar_lea.hbm %s5, %s482
          %s485 = sshll.u32 %s470, 4
          %s486 = int_to_ptr.vmem [resolvable:$true] %s485
          %488 = dma.vmem_to_hbm [thread:$0]  %s486, 256, %s483, %s467
        $region48: #{tpu_custom_call.1} parent=39 // pred_fallthru
          _
        // Predicated region
        $region49: #{tpu_custom_call.1} parent=39 // pred_check
          %p489 = pneg %p181
        $region50: #{tpu_custom_call.1} parent=39 // pred_check_branch
          %491 = sbr.rel (%p489) target = $region52
        $region51: #{tpu_custom_call.1} parent=39 // pred_region
          %s493 = ssub.s32 16, 16
          %494 = vsyncadd %s472, %s493
          %s495 = smul.addr %s27, 16
          %s496 = scalar_lea.hbm %s6, %s495
          %s498 = sshll.u32 %s474, 4
          %s499 = int_to_ptr.vmem [resolvable:$true] %s498
          %501 = dma.vmem_to_hbm [thread:$0]  %s499, 16, %s496, %s472
        $region52: #{tpu_custom_call.1} parent=39 // pred_fallthru
          _
      $region40: #{tpu_custom_call.1} parent=5 // pred_fallthru
        _
      %p502 = scmp.le.s32.totalorder 2, %s22
      // Predicated region
      $region53: #{tpu_custom_call.1} parent=5 // pred_check
        %p503 = pneg %p502
      $region54: #{tpu_custom_call.1} parent=5 // pred_check_branch
        %505 = sbr.rel (%p503) target = $region56
      $region55: #{tpu_custom_call.1} parent=5 // pred_region
        %s506 = ssub.s32 %s22, 2
        // Predicated region
        $region57: #{tpu_custom_call.1} parent=55 // pred_check
          %p507 = pneg %p161
        $region58: #{tpu_custom_call.1} parent=55 // pred_check_branch
          %509 = sbr.rel (%p507) target = $region60
        $region59: #{tpu_custom_call.1} parent=55 // pred_region
          %s510 = sand.u32 %s146, 1
          %s511 = scalar_lea.sflag [#allocation4], %s510
          %s512 = sand.u32 %s146, 1
          %s513 = smul.addr %s512, 16
          %s514 = scalar_lea.vmem [#allocation5], %s513
          %515 = dma.done %s511, 256
        $region60: #{tpu_custom_call.1} parent=55 // pred_fallthru
          _
        // Predicated region
        $region61: #{tpu_custom_call.1} parent=55 // pred_check
          %p516 = pneg %p187
        $region62: #{tpu_custom_call.1} parent=55 // pred_check_branch
          %518 = sbr.rel (%p516) target = $region64
        $region63: #{tpu_custom_call.1} parent=55 // pred_region
          %s519 = sand.u32 %s172, 1
          %s520 = scalar_lea.sflag [#allocation7], %s519
          %s521 = sand.u32 %s172, 1
          %s522 = scalar_lea.vmem [#allocation6], %s521
          %523 = dma.done %s520, 16
        $region64: #{tpu_custom_call.1} parent=55 // pred_fallthru
          _
      $region56: #{tpu_custom_call.1} parent=5 // pred_fallthru
        _
    $region6: #{tpu_custom_call.1} parent=1 // loop_footer
      %s26 = sadd.s32 1, %s22
    $region7: #{tpu_custom_call.1} parent=1 // loop_footer_branch
      %21 = sbr.rel target = $region3
    $region8: #{tpu_custom_call.1} parent=1 // loop_exit
      _
    %524 = vsyncpa [#allocation3], 1
    %s525 = scalar_lea.sflag [#allocation3], 1
    %526 = vsyncpa %s525, 1
    %527 = vsyncpa [#allocation4], 1
    %s528 = scalar_lea.sflag [#allocation4], 1
    %529 = vsyncpa %s528, 1
    %530 = vsyncpa [#allocation7], 1
    %s531 = scalar_lea.sflag [#allocation7], 1
    %532 = vsyncpa %s531, 1

</llo_original>
